<compile_context>
chip_gen: v7x
topology: tpu7x:2x2x1
jax: 0.10.0
libtpu: 0.0.40
codegen_flags: <defaults>
</compile_context>

<pallas_src>
import math

import jax
import jax.numpy as jnp
from jax import lax
from jax.experimental import pallas as pl
from jax.experimental.pallas import tpu as pltpu

NEG_SLOPE = 0.1
BN_EPS = 1e-3

LANE = 128      # lane-dense tile width for Cout and K tiles
TM_MAX = 256    # row tile; budgeted for v7x 64 MiB VMEM (fine on v5e/v6e too)


# ------------------------------- helpers ------------------------------------

def _round_up(x, m):
    return ((x + m - 1) // m) * m


def _pad2d(a, rows, cols):
    r, c = a.shape
    return jnp.pad(a, ((0, rows - r), (0, cols - c)))


# ----------------------------- Pallas kernels -------------------------------
# Fused conv-as-matmul kernel:
#   prologue : per-K-column BatchNorm scale/shift + LeakyReLU(0.1)   (VPU)
#   matmul   : f32 accumulate in VMEM scratch, K reduction on grid axis 2 (MXU)
#   epilogue : + bias (+ residual) on the last K step, lane-dense store

def _make_conv_kernel(has_residual):
    def _body(p_ref, w_ref, sc_ref, sh_ref, acc_ref):
        @pl.when(pl.program_id(2) == 0)
        def _():
            acc_ref[...] = jnp.zeros_like(acc_ref)

        a = p_ref[...] * sc_ref[...] + sh_ref[...]
        a = jnp.where(a >= 0, a, NEG_SLOPE * a)
        acc_ref[...] += jnp.dot(a, w_ref[...], preferred_element_type=jnp.float32)

    if has_residual:
        def kernel(p_ref, w_ref, sc_ref, sh_ref, b_ref, res_ref, o_ref, acc_ref):
            _body(p_ref, w_ref, sc_ref, sh_ref, acc_ref)

            @pl.when(pl.program_id(2) == pl.num_programs(2) - 1)
            def _():
                o_ref[...] = acc_ref[...] + b_ref[...] + res_ref[...]
    else:
        def kernel(p_ref, w_ref, sc_ref, sh_ref, b_ref, o_ref, acc_ref):
            _body(p_ref, w_ref, sc_ref, sh_ref, acc_ref)

            @pl.when(pl.program_id(2) == pl.num_programs(2) - 1)
            def _():
                o_ref[...] = acc_ref[...] + b_ref[...]

    return kernel


def conv_matmul_pallas(patches, w_mat, bias, scale_k, shift_k, residual=None):
    """out = leakyrelu(patches * scale_k + shift_k) @ w_mat + bias [+ residual].

    patches:  (M, K) raw (un-activated) im2col columns, f32
    w_mat:    (K, Cout) f32
    bias:     (Cout,) f32
    scale_k / shift_k: (K,) per-column folded-BN scale/shift
    residual: optional (M, Cout) f32 added in the epilogue
    returns   (M, Cout) f32
    """
    m, kdim = patches.shape
    _, cout = w_mat.shape

    tn = LANE
    tk = LANE
    m8 = _round_up(m, 8)
    tm = TM_MAX if m8 >= TM_MAX else m8
    m_pad = _round_up(m, tm)
    k_pad = _round_up(kdim, tk)
    c_pad = _round_up(cout, tn)

    p = _pad2d(patches, m_pad, k_pad)
    wp = _pad2d(w_mat, k_pad, c_pad)
    b2 = _pad2d(bias.reshape(1, -1), 1, c_pad)
    sc = _pad2d(scale_k.reshape(1, -1), 1, k_pad)
    sh = _pad2d(shift_k.reshape(1, -1), 1, k_pad)

    grid = (m_pad // tm, c_pad // tn, k_pad // tk)

    in_specs = [
        pl.BlockSpec((tm, tk), lambda i, j, kk: (i, kk)),   # patches stream
        pl.BlockSpec((tk, tn), lambda i, j, kk: (kk, j)),   # weights (ignores M idx)
        pl.BlockSpec((1, tk), lambda i, j, kk: (0, kk)),    # BN scale
        pl.BlockSpec((1, tk), lambda i, j, kk: (0, kk)),    # BN shift
        pl.BlockSpec((1, tn), lambda i, j, kk: (0, j)),     # bias
    ]
    args = [p, wp, sc, sh, b2]
    if residual is not None:
        in_specs.append(pl.BlockSpec((tm, tn), lambda i, j, kk: (i, j)))
        args.append(_pad2d(residual, m_pad, c_pad))

    flops = 2 * m_pad * k_pad * c_pad
    bytes_accessed = 4 * (
        m_pad * k_pad                              # patches
        + (m_pad // tm) * k_pad * c_pad            # weights re-streamed per M tile
        + m_pad * c_pad * (2 if residual is not None else 1)  # out (+ residual)
    )

    out = pl.pallas_call(
        _make_conv_kernel(residual is not None),
        out_shape=jax.ShapeDtypeStruct((m_pad, c_pad), jnp.float32),
        grid_spec=pltpu.PrefetchScalarGridSpec(
            num_scalar_prefetch=0,
            grid=grid,
            in_specs=in_specs,
            out_specs=pl.BlockSpec((tm, tn), lambda i, j, kk: (i, j)),
            scratch_shapes=[pltpu.VMEM((tm, tn), jnp.float32)],
        ),
        compiler_params=pltpu.CompilerParams(
            dimension_semantics=("parallel", "parallel", "arbitrary"),
            vmem_limit_bytes=32 * 1024 * 1024,
        ),
        cost_estimate=pl.CostEstimate(
            flops=flops, transcendentals=0, bytes_accessed=bytes_accessed),
    )(*args)
    return out[:m, :cout]


# ------------------------------- conv glue -----------------------------------

def _im2col(x_nhwc, ksize, stride, pad, pad_value=None):
    """Extract conv patches -> (N*Ho*Wo, k*k*Cin), tap-major / channel-minor.

    pad_value (per-channel) lets the in-kernel BN+LeakyReLU prologue reproduce
    zero-padding of the *activated* tensor exactly.
    """
    n, h, w, c = x_nhwc.shape
    if pad > 0:
        if pad_value is None:
            xp = jnp.pad(x_nhwc, ((0, 0), (pad, pad), (pad, pad), (0, 0)))
        else:
            pv = pad_value.reshape(1, 1, 1, c)
            xp = jnp.pad(x_nhwc - pv, ((0, 0), (pad, pad), (pad, pad), (0, 0))) + pv
    else:
        xp = x_nhwc
    ho = (h + 2 * pad - ksize) // stride + 1
    wo = (w + 2 * pad - ksize) // stride + 1
    cols = []
    for kh in range(ksize):
        for kw in range(ksize):
            cols.append(
                lax.slice(
                    xp,
                    (0, kh, kw, 0),
                    (n, kh + (ho - 1) * stride + 1, kw + (wo - 1) * stride + 1, c),
                    (1, stride, stride, 1),
                ))
    patches = jnp.concatenate(cols, axis=-1)          # (N, Ho, Wo, k*k*Cin)
    return patches.reshape(n * ho * wo, ksize * ksize * c), (n, ho, wo)


def _conv_weight_to_matrix(w_oihw):
    # (Cout, Cin, KH, KW) -> (KH*KW*Cin, Cout), matching im2col column order.
    cout, cin, kh, kw = w_oihw.shape
    return jnp.transpose(w_oihw, (2, 3, 1, 0)).reshape(kh * kw * cin, cout)


# --------------------------- BatchNorm folding -------------------------------

def _batch_stats_nhwc(x):
    mean = jnp.mean(x, axis=(0, 1, 2))
    var = jnp.mean((x - mean) ** 2, axis=(0, 1, 2))
    return mean, var


def _batch_stats_rows(x2d):
    mean = jnp.mean(x2d, axis=0)
    var = jnp.mean((x2d - mean) ** 2, axis=0)
    return mean, var


def _bn_scale_shift(mean, var, gamma, beta):
    scale = gamma / jnp.sqrt(var + BN_EPS)
    shift = beta - mean * scale
    return scale, shift


def _zero_activation_pad_value(scale, shift):
    # Per-channel v such that leakyrelu(v*scale + shift) == 0 exactly.
    safe = jnp.where(scale == 0, 1.0, scale)
    return jnp.where(scale == 0, 0.0, -shift / safe)


# ------------------------------- BasicBlock ----------------------------------

def basic_block_forward(x_nchw, params, stride, drop_rate=0.0):
    assert drop_rate == 0.0  # TODO(synk): dropout not implemented in-kernel.
    equal_in_out = "ws" not in params
    if equal_in_out:
        assert stride == 1, "identity residual requires stride==1 and Cin==Cout"

    x = jnp.transpose(x_nchw, (0, 2, 3, 1)).astype(jnp.float32)  # NHWC
    n, h, w, cin = x.shape
    cout = params["w1"].shape[0]

    # bn1 folded to per-channel scale/shift (training-mode batch statistics).
    m1, v1 = _batch_stats_nhwc(x)
    s1, t1 = _bn_scale_shift(m1, v1, params["bn1_gamma"], params["bn1_beta"])

    # conv1 (3x3, stride, pad=1) with bn1+relu1 fused into the matmul prologue.
    pv1 = _zero_activation_pad_value(s1, t1)
    patches1, (n_, ho, wo) = _im2col(x, 3, stride, 1, pad_value=pv1)
    out1 = conv_matmul_pallas(
        patches1, _conv_weight_to_matrix(params["w1"]), params["b1"],
        jnp.tile(s1, 9), jnp.tile(t1, 9))                       # (M, cout)

    # residual branch
    if equal_in_out:
        residual = x.reshape(n * h * w, cin)                    # raw input
    else:
        # shortcut conv (1x1, stride, pad=0) on the activated input.
        patches_s, _ = _im2col(x, 1, stride, 0)
        residual = conv_matmul_pallas(
            patches_s, _conv_weight_to_matrix(params["ws"]), params["bs"],
            s1, t1)

    # bn2 folded scale/shift from conv1-output batch statistics.
    m2, v2 = _batch_stats_rows(out1)
    s2, t2 = _bn_scale_shift(m2, v2, params["bn2_gamma"], params["bn2_beta"])

    # conv2 (3x3, stride=1, pad=1) with bn2+relu2 fused into the prologue and
    # the residual add fused into the epilogue.
    pv2 = _zero_activation_pad_value(s2, t2)
    patches2, _ = _im2col(out1.reshape(n, ho, wo, cout), 3, 1, 1, pad_value=pv2)
    y = conv_matmul_pallas(
        patches2, _conv_weight_to_matrix(params["w2"]), params["b2"],
        jnp.tile(s2, 9), jnp.tile(t2, 9), residual=residual)

    return jnp.transpose(y.reshape(n, ho, wo, cout), (0, 3, 1, 2))  # NCHW


# -------------------------------- reference ----------------------------------

def _ref_basic_block(x_nchw, params, stride):
    equal_in_out = "ws" not in params

    def bn(x, gamma, beta):
        mean = jnp.mean(x, axis=(0, 2, 3), keepdims=True)
        var = jnp.mean((x - mean) ** 2, axis=(0, 2, 3), keepdims=True)
        return (x - mean) / jnp.sqrt(var + BN_EPS) * gamma.reshape(1, -1, 1, 1) \
            + beta.reshape(1, -1, 1, 1)

    def lrelu(x):
        return jnp.where(x >= 0, x, NEG_SLOPE * x)

    def conv(x, wgt, b, s, p):
        y = lax.conv_general_dilated(
            x, wgt, (s, s), [(p, p), (p, p)],
            dimension_numbers=("NCHW", "OIHW", "NCHW"))
        return y + b.reshape(1, -1, 1, 1)

    act = lrelu(bn(x_nchw, params["bn1_gamma"], params["bn1_beta"]))
    if equal_in_out:
        res = x_nchw
    else:
        res = conv(act, params["ws"], params["bs"], stride, 0)
    h = conv(act, params["w1"], params["b1"], stride, 1)
    h = lrelu(bn(h, params["bn2_gamma"], params["bn2_beta"]))
    h = conv(h, params["w2"], params["b2"], 1, 1)
    return res + h


# --------------------------------- params ------------------------------------

def init_params(key, in_planes, out_planes):
    keys = jax.random.split(key, 10)
    p = {
        "bn1_gamma": jax.random.uniform(keys[0], (in_planes,), jnp.float32, 0.5, 1.5),
        "bn1_beta": 0.1 * jax.random.normal(keys[1], (in_planes,), jnp.float32),
        "w1": jax.random.normal(keys[2], (out_planes, in_planes, 3, 3), jnp.float32)
        / math.sqrt(9 * in_planes),
        "b1": 0.05 * jax.random.normal(keys[3], (out_planes,), jnp.float32),
        "bn2_gamma": jax.random.uniform(keys[4], (out_planes,), jnp.float32, 0.5, 1.5),
        "bn2_beta": 0.1 * jax.random.normal(keys[5], (out_planes,), jnp.float32),
        "w2": jax.random.normal(keys[6], (out_planes, out_planes, 3, 3), jnp.float32)
        / math.sqrt(9 * out_planes),
        "b2": 0.05 * jax.random.normal(keys[7], (out_planes,), jnp.float32),
    }
    if in_planes != out_planes:
        p["ws"] = jax.random.normal(keys[8], (out_planes, in_planes, 1, 1), jnp.float32) \
            / math.sqrt(in_planes)
        p["bs"] = 0.05 * jax.random.normal(keys[9], (out_planes,), jnp.float32)
    return p


# ---------------------------------- main --------------------------------------

if __name__ == "__main__":
    key = jax.random.PRNGKey(0)
    kx1, kx2, kp1, kp2 = jax.random.split(key, 4)

    # Case 1: in_planes != out_planes, stride=2 (convShortcut path)
    x1 = jax.random.normal(kx1, (2, 4, 16, 16), jnp.float32)
    params1 = init_params(kp1, in_planes=4, out_planes=8)
    y1 = jax.block_until_ready(basic_block_forward(x1, params1, stride=2))
    ref1 = jax.block_until_ready(_ref_basic_block(x1, params1, stride=2))
    assert y1.shape == (2, 8, 8, 8)
    assert jnp.allclose(y1, ref1, rtol=1e-4, atol=1e-4), "mismatch (shortcut case)"

    # Case 2: in_planes == out_planes, stride=1 (identity residual path)
    x2 = jax.random.normal(kx2, (2, 8, 16, 16), jnp.float32)
    params2 = init_params(kp2, in_planes=8, out_planes=8)
    y2 = jax.block_until_ready(basic_block_forward(x2, params2, stride=1))
    ref2 = jax.block_until_ready(_ref_basic_block(x2, params2, stride=1))
    assert y2.shape == (2, 8, 16, 16)
    assert jnp.allclose(y2, ref2, rtol=1e-4, atol=1e-4), "mismatch (identity case)"

    print("KERNEL_OK")
</pallas_src>

<mosaic_0001>
module attributes {stable_mosaic.version = 11 : i64} {
  func.func @kernel(%arg0: i32, %arg1: i32, %arg2: i32, %arg3: memref<128x128xf32, #tpu.memory_space<vmem>>, %arg4: memref<128x128xf32, #tpu.memory_space<vmem>>, %arg5: memref<1x128xf32, #tpu.memory_space<vmem>>, %arg6: memref<1x128xf32, #tpu.memory_space<vmem>>, %arg7: memref<1x128xf32, #tpu.memory_space<vmem>>, %arg8: memref<128x128xf32, #tpu.memory_space<vmem>>, %arg9: memref<128x128xf32, #tpu.memory_space<vmem>>) attributes {dimension_semantics = [#tpu.dimension_semantics<parallel>, #tpu.dimension_semantics<parallel>, #tpu.dimension_semantics<arbitrary>], iteration_bounds = array<i64: 1, 1, 1>, scalar_prefetch = 0 : i64, scratch_operands = 1 : i64, tpu.core_type = #tpu.core_type<tc>, window_params = [{transform_indices = @transform_0, window_bounds = array<i64: 128, 128>}, {transform_indices = @transform_1, window_bounds = array<i64: 128, 128>}, {transform_indices = @transform_2, window_bounds = array<i64: 1, 128>}, {transform_indices = @transform_3, window_bounds = array<i64: 1, 128>}, {transform_indices = @transform_4, window_bounds = array<i64: 1, 128>}, {transform_indices = @transform_5, window_bounds = array<i64: 128, 128>}]} {
    %c0_i32 = arith.constant 0 : i32
    %0 = arith.cmpi eq, %arg2, %c0_i32 : i32
    %1 = arith.extui %0 : i1 to i32
    %c0_i32_0 = arith.constant 0 : i32
    %2 = arith.cmpi ne, %1, %c0_i32_0 : i32
    scf.if %2 {
      %cst_16 = arith.constant 0.000000e+00 : f32
      %23 = vector.broadcast %cst_16 : f32 to vector<128x128xf32>
      %c0_17 = arith.constant 0 : index
      %c0_18 = arith.constant 0 : index
      %24 = vector.load %arg9[%c0_17, %c0_18] : memref<128x128xf32, #tpu.memory_space<vmem>>, vector<128x128xf32>
      tpu.vector_store %arg9[%c0_17, %c0_18], %23 {strides = array<i32>} : memref<128x128xf32, #tpu.memory_space<vmem>>, vector<128x128xf32>,
    } else {
    }
    %c0 = arith.constant 0 : index
    %c0_1 = arith.constant 0 : index
    %3 = vector.load %arg3[%c0, %c0_1] : memref<128x128xf32, #tpu.memory_space<vmem>>, vector<128x128xf32>
    %c0_2 = arith.constant 0 : index
    %c0_3 = arith.constant 0 : index
    %4 = vector.load %arg5[%c0_2, %c0_3] : memref<1x128xf32, #tpu.memory_space<vmem>>, vector<1x128xf32>
    %5 = vector.broadcast %4 : vector<1x128xf32> to vector<128x128xf32>
    %6 = arith.mulf %3, %5 : vector<128x128xf32>
    %c0_4 = arith.constant 0 : index
    %c0_5 = arith.constant 0 : index
    %7 = vector.load %arg6[%c0_4, %c0_5] : memref<1x128xf32, #tpu.memory_space<vmem>>, vector<1x128xf32>
    %8 = vector.broadcast %7 : vector<1x128xf32> to vector<128x128xf32>
    %9 = arith.addf %6, %8 : vector<128x128xf32>
    %cst = arith.constant 0.000000e+00 : f32
    %10 = vector.broadcast %cst : f32 to vector<128x128xf32>
    %11 = arith.cmpf oge, %9, %10 : vector<128x128xf32>
    %cst_6 = arith.constant 1.000000e-01 : f32
    %12 = vector.broadcast %cst_6 : f32 to vector<128x128xf32>
    %13 = arith.mulf %12, %9 : vector<128x128xf32>
    %14 = arith.select %11, %9, %13 : vector<128x128xi1>, vector<128x128xf32>
    %c0_7 = arith.constant 0 : index
    %c0_8 = arith.constant 0 : index
    %15 = vector.load %arg9[%c0_7, %c0_8] : memref<128x128xf32, #tpu.memory_space<vmem>>, vector<128x128xf32>
    %c0_9 = arith.constant 0 : index
    %c0_10 = arith.constant 0 : index
    %16 = vector.load %arg4[%c0_9, %c0_10] : memref<128x128xf32, #tpu.memory_space<vmem>>, vector<128x128xf32>
    %cst_11 = arith.constant dense<0.000000e+00> : vector<128x128xf32>
    %17 = tpu.matmul %14, %16, %cst_11 {dimension_numbers = #tpu.dot_dimension_numbers<[1], [0], [0], [1], [0, 0, 1, 1], [], []>} : vector<128x128xf32>, vector<128x128xf32>, vector<128x128xf32> -> vector<128x128xf32>
    %18 = arith.addf %15, %17 : vector<128x128xf32>
    %c0_12 = arith.constant 0 : index
    %c0_13 = arith.constant 0 : index
    %19 = vector.load %arg9[%c0_12, %c0_13] : memref<128x128xf32, #tpu.memory_space<vmem>>, vector<128x128xf32>
    tpu.vector_store %arg9[%c0_12, %c0_13], %18 {strides = array<i32>} : memref<128x128xf32, #tpu.memory_space<vmem>>, vector<128x128xf32>,
    %c0_i32_14 = arith.constant 0 : i32
    %20 = arith.cmpi eq, %arg2, %c0_i32_14 : i32
    %21 = arith.extui %20 : i1 to i32
    %c0_i32_15 = arith.constant 0 : i32
    %22 = arith.cmpi ne, %21, %c0_i32_15 : i32
    scf.if %22 {
      %c0_16 = arith.constant 0 : index
      %c0_17 = arith.constant 0 : index
      %23 = vector.load %arg9[%c0_16, %c0_17] : memref<128x128xf32, #tpu.memory_space<vmem>>, vector<128x128xf32>
      %c0_18 = arith.constant 0 : index
      %c0_19 = arith.constant 0 : index
      %24 = vector.load %arg7[%c0_18, %c0_19] : memref<1x128xf32, #tpu.memory_space<vmem>>, vector<1x128xf32>
      %25 = vector.broadcast %24 : vector<1x128xf32> to vector<128x128xf32>
      %26 = arith.addf %23, %25 : vector<128x128xf32>
      %c0_20 = arith.constant 0 : index
      %c0_21 = arith.constant 0 : index
      %27 = vector.load %arg8[%c0_20, %c0_21] : memref<128x128xf32, #tpu.memory_space<vmem>>, vector<128x128xf32>
      tpu.vector_store %arg8[%c0_20, %c0_21], %26 {strides = array<i32>} : memref<128x128xf32, #tpu.memory_space<vmem>>, vector<128x128xf32>,
    } else {
    }
    return
  }
  func.func @transform_0(%arg0: i32, %arg1: i32, %arg2: i32) -> (i32, i32) {
    %c0_i32 = arith.constant 0 : i32
    return %arg0, %arg2 : i32, i32
  }
  func.func @transform_1(%arg0: i32, %arg1: i32, %arg2: i32) -> (i32, i32) {
    %c0_i32 = arith.constant 0 : i32
    return %arg2, %arg1 : i32, i32
  }
  func.func @transform_2(%arg0: i32, %arg1: i32, %arg2: i32) -> (i32, i32) {
    %c0_i32 = arith.constant 0 : i32
    %c0_i32_0 = arith.constant 0 : i32
    return %c0_i32, %arg2 : i32, i32
  }
  func.func @transform_3(%arg0: i32, %arg1: i32, %arg2: i32) -> (i32, i32) {
    %c0_i32 = arith.constant 0 : i32
    %c0_i32_0 = arith.constant 0 : i32
    return %c0_i32, %arg2 : i32, i32
  }
  func.func @transform_4(%arg0: i32, %arg1: i32, %arg2: i32) -> (i32, i32) {
    %c0_i32 = arith.constant 0 : i32
    %c0_i32_0 = arith.constant 0 : i32
    return %c0_i32, %arg1 : i32, i32
  }
  func.func @transform_5(%arg0: i32, %arg1: i32, %arg2: i32) -> (i32, i32) {
    %c0_i32 = arith.constant 0 : i32
    return %arg0, %arg1 : i32, i32
  }
}

</mosaic_0001>

<llo_original>
// kernel: tpu_custom_call.1
$region0: #{tpu_custom_call.1}
  #allocation0 [shape = 'u32[]', space=smem, size = 0x4, offset = 0x4, fixed_abs, tag = 'smem constant byte address 0x4 - core index']
  #allocation1 [shape = 'u32[144,128]{1,0:T(1,128)}', space=vmem, size = 0x12000, scoped, tag = 'internal scratch']
  #allocation2 [shape = 'f32[128,128]{1,0:T(8,128)}', space=vmem, size = 0x10000, scoped, tag = 'scratch operand']
  %s0 = inlined_call_operand.hbm [shape: f32[128,128], index: 0, kind: input, shape index: {}]
  %s1 = inlined_call_operand.hbm [shape: f32[128,128], index: 1, kind: input, shape index: {}]
  %s2 = inlined_call_operand.vmem [shape: f32[1,128], index: 2, kind: input, shape index: {}]
  %s3 = inlined_call_operand.vmem [shape: f32[1,128], index: 3, kind: input, shape index: {}]
  %s4 = inlined_call_operand.vmem [shape: f32[1,128], index: 4, kind: input, shape index: {}]
  %s5 = inlined_call_operand.hbm [shape: f32[128,128], index: 5, kind: output, shape index: {}]
  %s6 = sld [smem:[#allocation0]]
  $region46: #{tpu_custom_call.1} parent=0
    _
  %s8 = ssub.s32 1, %s6
  %s9 = scalar_select 0, %s8, %s6
  $region1: #{tpu_custom_call.1} parent=0
    #allocation3 [shape = 'u8[65536]{0}', space=vmem, size = 0x10000, scoped, tag = 'input window, operand 0, single buffered']
    #allocation4 [shape = 's32[1]{0}', space=sflag, size = 0x4, scoped, tag = 'scoped memory for tpu_custom_call.1']
    #allocation5 [shape = 's32[1]{0}', space=sflag, size = 0x4, scoped, tag = 'scoped memory for tpu_custom_call.1']
    #allocation6 [shape = 'u8[65536]{0}', space=vmem, size = 0x10000, scoped, tag = 'input window, operand 1, single buffered']
    #allocation7 [shape = 's32[1]{0}', space=sflag, size = 0x4, scoped, tag = 'scoped memory for tpu_custom_call.1']
    #allocation8 [shape = 'u8[65536]{0}', space=vmem, size = 0x10000, scoped, tag = 'output window, operand 0, single buffered']
    %10 = vsyncpa [#allocation4], 0
    %11 = vsyncpa [#allocation7], 0
    %12 = vsyncpa [#allocation5], 0
    // Predicated region
    $region2: #{tpu_custom_call.1} parent=1 // pred_check
      _
    $region3: #{tpu_custom_call.1} parent=1 // pred_check_branch
      %14 = sbr.rel (0) target = $region5
    $region4: #{tpu_custom_call.1} parent=1 // pred_region
      %s16 = ssub.s32 2048, 2048
      %17 = vsyncadd [#allocation4], %s16
      %s18 = sshll.u32 [#allocation3], 4
      %s19 = int_to_ptr.vmem [resolvable:$true] %s18
      %24 = dma.hbm_to_vmem [thread:$0]  %s0, 2048, %s19, [#allocation4], 128, 128, 8
    $region5: #{tpu_custom_call.1} parent=1 // pred_fallthru
      _
    // Predicated region
    $region6: #{tpu_custom_call.1} parent=1 // pred_check
      _
    $region7: #{tpu_custom_call.1} parent=1 // pred_check_branch
      %26 = sbr.rel (0) target = $region9
    $region8: #{tpu_custom_call.1} parent=1 // pred_region
      %s28 = ssub.s32 2048, 2048
      %29 = vsyncadd [#allocation7], %s28
      %s30 = sshll.u32 [#allocation6], 4
      %s31 = int_to_ptr.vmem [resolvable:$true] %s30
      %36 = dma.hbm_to_vmem [thread:$0]  %s1, 2048, %s31, [#allocation7], 128, 128, 8
    $region9: #{tpu_custom_call.1} parent=1 // pred_fallthru
      _
    // Predicated region
    $region10: #{tpu_custom_call.1} parent=1 // pred_check
      _
    $region11: #{tpu_custom_call.1} parent=1 // pred_check_branch
      %38 = sbr.rel (0) target = $region13
    $region12: #{tpu_custom_call.1} parent=1 // pred_region
      _
    $region13: #{tpu_custom_call.1} parent=1 // pred_fallthru
      _
    // Predicated region
    $region14: #{tpu_custom_call.1} parent=1 // pred_check
      _
    $region15: #{tpu_custom_call.1} parent=1 // pred_check_branch
      %40 = sbr.rel (0) target = $region17
    $region16: #{tpu_custom_call.1} parent=1 // pred_region
      _
    $region17: #{tpu_custom_call.1} parent=1 // pred_fallthru
      _
    // Predicated region
    $region18: #{tpu_custom_call.1} parent=1 // pred_check
      _
    $region19: #{tpu_custom_call.1} parent=1 // pred_check_branch
      %42 = sbr.rel (0) target = $region21
    $region20: #{tpu_custom_call.1} parent=1 // pred_region
      _
    $region21: #{tpu_custom_call.1} parent=1 // pred_fallthru
      _
    // Predicated region
    $region22: #{tpu_custom_call.1} parent=1 // pred_check
      _
    $region23: #{tpu_custom_call.1} parent=1 // pred_check_branch
      %44 = sbr.rel (0) target = $region25
    $region24: #{tpu_custom_call.1} parent=1 // pred_region
      %45 = dma.done [#allocation4], 2048
    $region25: #{tpu_custom_call.1} parent=1 // pred_fallthru
      _
    // Predicated region
    $region26: #{tpu_custom_call.1} parent=1 // pred_check
      _
    $region27: #{tpu_custom_call.1} parent=1 // pred_check_branch
      %47 = sbr.rel (0) target = $region29
    $region28: #{tpu_custom_call.1} parent=1 // pred_region
      %48 = dma.done [#allocation7], 2048
    $region29: #{tpu_custom_call.1} parent=1 // pred_fallthru
      _
    %p49 = scmp.eq.s32.totalorder 0, 0
    // Predicated region
    $region30: #{tpu_custom_call.1} parent=1 // pred_check
      %p50 = pneg %p49
    $region31: #{tpu_custom_call.1} parent=1 // pred_check_branch
      %52 = sbr.rel (%p50) target = $region33
    $region32: #{tpu_custom_call.1} parent=1 // pred_region
      %53 = vst [vmem:[#allocation2] sm:$0xff] 0.0
      %54 = vst [vmem:[#allocation2 + $0x8] sm:$0xff] 0.0
      %55 = vst [vmem:[#allocation2 + $0x10] sm:$0xff] 0.0
      %56 = vst [vmem:[#allocation2 + $0x18] sm:$0xff] 0.0
      %57 = vst [vmem:[#allocation2 + $0x20] sm:$0xff] 0.0
      %58 = vst [vmem:[#allocation2 + $0x28] sm:$0xff] 0.0
      %59 = vst [vmem:[#allocation2 + $0x30] sm:$0xff] 0.0
      %60 = vst [vmem:[#allocation2 + $0x38] sm:$0xff] 0.0
      %61 = vst [vmem:[#allocation2 + $0x40] sm:$0xff] 0.0
      %62 = vst [vmem:[#allocation2 + $0x48] sm:$0xff] 0.0
      %63 = vst [vmem:[#allocation2 + $0x50] sm:$0xff] 0.0
      %64 = vst [vmem:[#allocation2 + $0x58] sm:$0xff] 0.0
      %65 = vst [vmem:[#allocation2 + $0x60] sm:$0xff] 0.0
      %66 = vst [vmem:[#allocation2 + $0x68] sm:$0xff] 0.0
      %67 = vst [vmem:[#allocation2 + $0x70] sm:$0xff] 0.0
      %68 = vst [vmem:[#allocation2 + $0x78] sm:$0xff] 0.0
    $region33: #{tpu_custom_call.1} parent=1 // pred_fallthru
      _
    %v69 = vld [vmem:[#allocation3] sm:$0xff]
    %v70 = vld [vmem:[#allocation3 + $0x8] sm:$0xff]
    %v71 = vld [vmem:[#allocation3 + $0x10] sm:$0xff]
    %v72 = vld [vmem:[#allocation3 + $0x18] sm:$0xff]
    %v73 = vld [vmem:[#allocation3 + $0x20] sm:$0xff]
    %v74 = vld [vmem:[#allocation3 + $0x28] sm:$0xff]
    %v75 = vld [vmem:[#allocation3 + $0x30] sm:$0xff]
    %v76 = vld [vmem:[#allocation3 + $0x38] sm:$0xff]
    %v77 = vld [vmem:[#allocation3 + $0x40] sm:$0xff]
    %v78 = vld [vmem:[#allocation3 + $0x48] sm:$0xff]
    %v79 = vld [vmem:[#allocation3 + $0x50] sm:$0xff]
    %v80 = vld [vmem:[#allocation3 + $0x58] sm:$0xff]
    %v81 = vld [vmem:[#allocation3 + $0x60] sm:$0xff]
    %v82 = vld [vmem:[#allocation3 + $0x68] sm:$0xff]
    %v83 = vld [vmem:[#allocation3 + $0x70] sm:$0xff]
    %v84 = vld [vmem:[#allocation3 + $0x78] sm:$0xff]
    %v85 = vld [vmem:[%s2] sm:$0x1]
    %v87 = vlaneseq
    %v88 = vshrl.u32 %v87, 7
    %v89 = vsub.s32 0, %v88
    %v90 = vrot.slane %v85, %v89
    %v92 = vmul.f32 %v69, %v90
    %v93 = vmul.f32 %v70, %v90
    %v94 = vmul.f32 %v71, %v90
    %v95 = vmul.f32 %v72, %v90
    %v96 = vmul.f32 %v73, %v90
    %v97 = vmul.f32 %v74, %v90
    %v98 = vmul.f32 %v75, %v90
    %v99 = vmul.f32 %v76, %v90
    %v100 = vmul.f32 %v77, %v90
    %v101 = vmul.f32 %v78, %v90
    %v102 = vmul.f32 %v79, %v90
    %v103 = vmul.f32 %v80, %v90
    %v104 = vmul.f32 %v81, %v90
    %v105 = vmul.f32 %v82, %v90
    %v106 = vmul.f32 %v83, %v90
    %v107 = vmul.f32 %v84, %v90
    %v108 = vld [vmem:[%s3] sm:$0x1]
    %v110 = vlaneseq
    %v111 = vshrl.u32 %v110, 7
    %v112 = vsub.s32 0, %v111
    %v113 = vrot.slane %v108, %v112
    %v115 = vadd.f32 %v92, %v113
    %v116 = vadd.f32 %v93, %v113
    %v117 = vadd.f32 %v94, %v113
    %v118 = vadd.f32 %v95, %v113
    %v119 = vadd.f32 %v96, %v113
    %v120 = vadd.f32 %v97, %v113
    %v121 = vadd.f32 %v98, %v113
    %v122 = vadd.f32 %v99, %v113
    %v123 = vadd.f32 %v100, %v113
    %v124 = vadd.f32 %v101, %v113
    %v125 = vadd.f32 %v102, %v113
    %v126 = vadd.f32 %v103, %v113
    %v127 = vadd.f32 %v104, %v113
    %v128 = vadd.f32 %v105, %v113
    %v129 = vadd.f32 %v106, %v113
    %v130 = vadd.f32 %v107, %v113
    %vm131 = vcmp.ge.f32.partialorder %v115, 0.0
    %vm132 = vcmp.ge.f32.partialorder %v116, 0.0
    %vm133 = vcmp.ge.f32.partialorder %v117, 0.0
    %vm134 = vcmp.ge.f32.partialorder %v118, 0.0
    %vm135 = vcmp.ge.f32.partialorder %v119, 0.0
    %vm136 = vcmp.ge.f32.partialorder %v120, 0.0
    %vm137 = vcmp.ge.f32.partialorder %v121, 0.0
    %vm138 = vcmp.ge.f32.partialorder %v122, 0.0
    %vm139 = vcmp.ge.f32.partialorder %v123, 0.0
    %vm140 = vcmp.ge.f32.partialorder %v124, 0.0
    %vm141 = vcmp.ge.f32.partialorder %v125, 0.0
    %vm142 = vcmp.ge.f32.partialorder %v126, 0.0
    %vm143 = vcmp.ge.f32.partialorder %v127, 0.0
    %vm144 = vcmp.ge.f32.partialorder %v128, 0.0
    %vm145 = vcmp.ge.f32.partialorder %v129, 0.0
    %vm146 = vcmp.ge.f32.partialorder %v130, 0.0
    %v147 = vmul.f32 %v115, 0.1
    %v148 = vmul.f32 %v116, 0.1
    %v149 = vmul.f32 %v117, 0.1
    %v150 = vmul.f32 %v118, 0.1
    %v151 = vmul.f32 %v119, 0.1
    %v152 = vmul.f32 %v120, 0.1
    %v153 = vmul.f32 %v121, 0.1
    %v154 = vmul.f32 %v122, 0.1
    %v155 = vmul.f32 %v123, 0.1
    %v156 = vmul.f32 %v124, 0.1
    %v157 = vmul.f32 %v125, 0.1
    %v158 = vmul.f32 %v126, 0.1
    %v159 = vmul.f32 %v127, 0.1
    %v160 = vmul.f32 %v128, 0.1
    %v161 = vmul.f32 %v129, 0.1
    %v162 = vmul.f32 %v130, 0.1
    %v163 = vsel %vm131, %v115, %v147
    %v164 = vsel %vm132, %v116, %v148
    %v165 = vsel %vm133, %v117, %v149
    %v166 = vsel %vm134, %v118, %v150
    %v167 = vsel %vm135, %v119, %v151
    %v168 = vsel %vm136, %v120, %v152
    %v169 = vsel %vm137, %v121, %v153
    %v170 = vsel %vm138, %v122, %v154
    %v171 = vsel %vm139, %v123, %v155
    %v172 = vsel %vm140, %v124, %v156
    %v173 = vsel %vm141, %v125, %v157
    %v174 = vsel %vm142, %v126, %v158
    %v175 = vsel %vm143, %v127, %v159
    %v176 = vsel %vm144, %v128, %v160
    %v177 = vsel %vm145, %v129, %v161
    %v178 = vsel %vm146, %v130, %v162
    %v179 = vld [vmem:[#allocation2] sm:$0xff]
    %v180 = vld [vmem:[#allocation2 + $0x8] sm:$0xff]
    %v181 = vld [vmem:[#allocation2 + $0x10] sm:$0xff]
    %v182 = vld [vmem:[#allocation2 + $0x18] sm:$0xff]
    %v183 = vld [vmem:[#allocation2 + $0x20] sm:$0xff]
    %v184 = vld [vmem:[#allocation2 + $0x28] sm:$0xff]
    %v185 = vld [vmem:[#allocation2 + $0x30] sm:$0xff]
    %v186 = vld [vmem:[#allocation2 + $0x38] sm:$0xff]
    %v187 = vld [vmem:[#allocation2 + $0x40] sm:$0xff]
    %v188 = vld [vmem:[#allocation2 + $0x48] sm:$0xff]
    %v189 = vld [vmem:[#allocation2 + $0x50] sm:$0xff]
    %v190 = vld [vmem:[#allocation2 + $0x58] sm:$0xff]
    %v191 = vld [vmem:[#allocation2 + $0x60] sm:$0xff]
    %v192 = vld [vmem:[#allocation2 + $0x68] sm:$0xff]
    %v193 = vld [vmem:[#allocation2 + $0x70] sm:$0xff]
    %v194 = vld [vmem:[#allocation2 + $0x78] sm:$0xff]
    %v195 = vld [vmem:[#allocation6] sm:$0xff]
    %v196 = vld [vmem:[#allocation6 + $0x8] sm:$0xff]
    %v197 = vld [vmem:[#allocation6 + $0x10] sm:$0xff]
    %v198 = vld [vmem:[#allocation6 + $0x18] sm:$0xff]
    %v199 = vld [vmem:[#allocation6 + $0x20] sm:$0xff]
    %v200 = vld [vmem:[#allocation6 + $0x28] sm:$0xff]
    %v201 = vld [vmem:[#allocation6 + $0x30] sm:$0xff]
    %v202 = vld [vmem:[#allocation6 + $0x38] sm:$0xff]
    %v203 = vld [vmem:[#allocation6 + $0x40] sm:$0xff]
    %v204 = vld [vmem:[#allocation6 + $0x48] sm:$0xff]
    %v205 = vld [vmem:[#allocation6 + $0x50] sm:$0xff]
    %v206 = vld [vmem:[#allocation6 + $0x58] sm:$0xff]
    %v207 = vld [vmem:[#allocation6 + $0x60] sm:$0xff]
    %v208 = vld [vmem:[#allocation6 + $0x68] sm:$0xff]
    %v209 = vld [vmem:[#allocation6 + $0x70] sm:$0xff]
    %v210 = vld [vmem:[#allocation6 + $0x78] sm:$0xff]
    %211 = vmatprep.subr.mxu0 0.0
    %212 = vmatpush1.msra.mxu0 %v195
    %213 = vmatprep.subr.mxu0 0.0
    %214 = vmatpush1.msra.mxu0 %v196
    %215 = vmatprep.subr.mxu0 0.0
    %216 = vmatpush1.msra.mxu0 %v197
    %217 = vmatprep.subr.mxu0 0.0
    %218 = vmatpush1.msra.mxu0 %v198
    %219 = vmatprep.subr.mxu0 0.0
    %220 = vmatpush1.msra.mxu0 %v199
    %221 = vmatprep.subr.mxu0 0.0
    %222 = vmatpush1.msra.mxu0 %v200
    %223 = vmatprep.subr.mxu0 0.0
    %224 = vmatpush1.msra.mxu0 %v201
    %225 = vmatprep.subr.mxu0 0.0
    %226 = vmatpush1.msra.mxu0 %v202
    %227 = vmatprep.subr.mxu0 0.0
    %228 = vmatpush1.msra.mxu0 %v203
    %229 = vmatprep.subr.mxu0 0.0
    %230 = vmatpush1.msra.mxu0 %v204
    %231 = vmatprep.subr.mxu0 0.0
    %232 = vmatpush1.msra.mxu0 %v205
    %233 = vmatprep.subr.mxu0 0.0
    %234 = vmatpush1.msra.mxu0 %v206
    %235 = vmatprep.subr.mxu0 0.0
    %236 = vmatpush1.msra.mxu0 %v207
    %237 = vmatprep.subr.mxu0 0.0
    %238 = vmatpush1.msra.mxu0 %v208
    %239 = vmatprep.subr.mxu0 0.0
    %240 = vmatpush1.msra.mxu0 %v209
    %241 = vmatprep.subr.mxu0 0.0
    %242 = vmatpush1.msra.mxu0 %v210
    %243 = vmatprep.subr.mxu0 0.0
    %244 = vmatpush1.msra.mxu0 0.0
    %245 = vmatprep.subr.mxu0 0.0
    %246 = vmatpush1.msra.mxu0 0.0
    %247 = vmatprep.subr.mxu0 0.0
    %248 = vmatpush1.msra.mxu0 0.0
    %249 = vmatprep.subr.mxu0 0.0
    %250 = vmatpush1.msra.mxu0 0.0
    %251 = vmatprep.subr.mxu0 0.0
    %252 = vmatpush1.msra.mxu0 0.0
    %253 = vmatprep.subr.mxu0 0.0
    %254 = vmatpush1.msra.mxu0 0.0
    %255 = vmatprep.subr.mxu0 0.0
    %256 = vmatpush1.msra.mxu0 0.0
    %257 = vmatprep.subr.mxu0 0.0
    %258 = vmatpush1.msra.mxu0 0.0
    %259 = vmatprep.subr.mxu0 0.0
    %260 = vmatpush1.msra.mxu0 0.0
    %261 = vmatprep.subr.mxu0 0.0
    %262 = vmatpush1.msra.mxu0 0.0
    %263 = vmatprep.subr.mxu0 0.0
    %264 = vmatpush1.msra.mxu0 0.0
    %265 = vmatprep.subr.mxu0 0.0
    %266 = vmatpush1.msra.mxu0 0.0
    %267 = vmatprep.subr.mxu0 0.0
    %268 = vmatpush1.msra.mxu0 0.0
    %269 = vmatprep.subr.mxu0 0.0
    %270 = vmatpush1.msra.mxu0 0.0
    %271 = vmatprep.subr.mxu0 0.0
    %272 = vmatpush1.msra.mxu0 0.0
    %273 = vmatprep.subr.mxu0 0.0
    %274 = vmatpush1.msra.mxu0 0.0
    %275 = vmatprep.mubr.f32.mxu0 0.0
    %276 = vmatmul.mubr.f32.gmra.mrb[0].mxu0 %v163
    %v277 = vpop.f32.mrb[0].mxu0
    %v278 = vadd.f32 0.0, %v277
    %v279 = vpop.f32.mrb[0].mxu0
    %280 = vmatprep.mubr.f32.mxu0 0.0
    %281 = vmatmul.mubr.f32.gmra.mrb[0].mxu0 %v164
    %v282 = vpop.f32.mrb[0].mxu0
    %v283 = vadd.f32 0.0, %v282
    %v284 = vpop.f32.mrb[0].mxu0
    %285 = vmatprep.mubr.f32.mxu0 0.0
    %286 = vmatmul.mubr.f32.gmra.mrb[0].mxu0 %v165
    %v287 = vpop.f32.mrb[0].mxu0
    %v288 = vadd.f32 0.0, %v287
    %v289 = vpop.f32.mrb[0].mxu0
    %290 = vmatprep.mubr.f32.mxu0 0.0
    %291 = vmatmul.mubr.f32.gmra.mrb[0].mxu0 %v166
    %v292 = vpop.f32.mrb[0].mxu0
    %v293 = vadd.f32 0.0, %v292
    %v294 = vpop.f32.mrb[0].mxu0
    %295 = vmatprep.mubr.f32.mxu0 0.0
    %296 = vmatmul.mubr.f32.gmra.mrb[0].mxu0 %v167
    %v297 = vpop.f32.mrb[0].mxu0
    %v298 = vadd.f32 0.0, %v297
    %v299 = vpop.f32.mrb[0].mxu0
    %300 = vmatprep.mubr.f32.mxu0 0.0
    %301 = vmatmul.mubr.f32.gmra.mrb[0].mxu0 %v168
    %v302 = vpop.f32.mrb[0].mxu0
    %v303 = vadd.f32 0.0, %v302
    %v304 = vpop.f32.mrb[0].mxu0
    %305 = vmatprep.mubr.f32.mxu0 0.0
    %306 = vmatmul.mubr.f32.gmra.mrb[0].mxu0 %v169
    %v307 = vpop.f32.mrb[0].mxu0
    %v308 = vadd.f32 0.0, %v307
    %v309 = vpop.f32.mrb[0].mxu0
    %310 = vmatprep.mubr.f32.mxu0 0.0
    %311 = vmatmul.mubr.f32.gmra.mrb[0].mxu0 %v170
    %v312 = vpop.f32.mrb[0].mxu0
    %v313 = vadd.f32 0.0, %v312
    %v314 = vpop.f32.mrb[0].mxu0
    %315 = vmatprep.mubr.f32.mxu0 0.0
    %316 = vmatmul.mubr.f32.gmra.mrb[0].mxu0 %v171
    %v317 = vpop.f32.mrb[0].mxu0
    %v318 = vadd.f32 0.0, %v317
    %v319 = vpop.f32.mrb[0].mxu0
    %320 = vmatprep.mubr.f32.mxu0 0.0
    %321 = vmatmul.mubr.f32.gmra.mrb[0].mxu0 %v172
    %v322 = vpop.f32.mrb[0].mxu0
    %v323 = vadd.f32 0.0, %v322
    %v324 = vpop.f32.mrb[0].mxu0
    %325 = vmatprep.mubr.f32.mxu0 0.0
    %326 = vmatmul.mubr.f32.gmra.mrb[0].mxu0 %v173
    %v327 = vpop.f32.mrb[0].mxu0
    %v328 = vadd.f32 0.0, %v327
    %v329 = vpop.f32.mrb[0].mxu0
    %330 = vmatprep.mubr.f32.mxu0 0.0
    %331 = vmatmul.mubr.f32.gmra.mrb[0].mxu0 %v174
    %v332 = vpop.f32.mrb[0].mxu0
    %v333 = vadd.f32 0.0, %v332
    %v334 = vpop.f32.mrb[0].mxu0
    %335 = vmatprep.mubr.f32.mxu0 0.0
    %336 = vmatmul.mubr.f32.gmra.mrb[0].mxu0 %v175
    %v337 = vpop.f32.mrb[0].mxu0
    %v338 = vadd.f32 0.0, %v337
    %v339 = vpop.f32.mrb[0].mxu0
    %340 = vmatprep.mubr.f32.mxu0 0.0
    %341 = vmatmul.mubr.f32.gmra.mrb[0].mxu0 %v176
    %v342 = vpop.f32.mrb[0].mxu0
    %v343 = vadd.f32 0.0, %v342
    %v344 = vpop.f32.mrb[0].mxu0
    %345 = vmatprep.mubr.f32.mxu0 0.0
    %346 = vmatmul.mubr.f32.gmra.mrb[0].mxu0 %v177
    %v347 = vpop.f32.mrb[0].mxu0
    %v348 = vadd.f32 0.0, %v347
    %v349 = vpop.f32.mrb[0].mxu0
    %350 = vmatprep.mubr.f32.mxu0 0.0
    %351 = vmatmul.mubr.f32.gmra.mrb[0].mxu0 %v178
    %v352 = vpop.f32.mrb[0].mxu0
    %v353 = vadd.f32 0.0, %v352
    %v354 = vpop.f32.mrb[0].mxu0
    %355 = vdwg.mxu0
    %v356 = vadd.f32 %v179, %v278
    %v357 = vadd.f32 %v180, %v283
    %v358 = vadd.f32 %v181, %v288
    %v359 = vadd.f32 %v182, %v293
    %v360 = vadd.f32 %v183, %v298
    %v361 = vadd.f32 %v184, %v303
    %v362 = vadd.f32 %v185, %v308
    %v363 = vadd.f32 %v186, %v313
    %v364 = vadd.f32 %v187, %v318
    %v365 = vadd.f32 %v188, %v323
    %v366 = vadd.f32 %v189, %v328
    %v367 = vadd.f32 %v190, %v333
    %v368 = vadd.f32 %v191, %v338
    %v369 = vadd.f32 %v192, %v343
    %v370 = vadd.f32 %v193, %v348
    %v371 = vadd.f32 %v194, %v353
    %372 = vst [vmem:[#allocation2] sm:$0xff] %v356
    %373 = vst [vmem:[#allocation2 + $0x8] sm:$0xff] %v357
    %374 = vst [vmem:[#allocation2 + $0x10] sm:$0xff] %v358
    %375 = vst [vmem:[#allocation2 + $0x18] sm:$0xff] %v359
    %376 = vst [vmem:[#allocation2 + $0x20] sm:$0xff] %v360
    %377 = vst [vmem:[#allocation2 + $0x28] sm:$0xff] %v361
    %378 = vst [vmem:[#allocation2 + $0x30] sm:$0xff] %v362
    %379 = vst [vmem:[#allocation2 + $0x38] sm:$0xff] %v363
    %380 = vst [vmem:[#allocation2 + $0x40] sm:$0xff] %v364
    %381 = vst [vmem:[#allocation2 + $0x48] sm:$0xff] %v365
    %382 = vst [vmem:[#allocation2 + $0x50] sm:$0xff] %v366
    %383 = vst [vmem:[#allocation2 + $0x58] sm:$0xff] %v367
    %384 = vst [vmem:[#allocation2 + $0x60] sm:$0xff] %v368
    %385 = vst [vmem:[#allocation2 + $0x68] sm:$0xff] %v369
    %386 = vst [vmem:[#allocation2 + $0x70] sm:$0xff] %v370
    %387 = vst [vmem:[#allocation2 + $0x78] sm:$0xff] %v371
    // Predicated region
    $region34: #{tpu_custom_call.1} parent=1 // pred_check
      %p388 = pneg %p49
    $region35: #{tpu_custom_call.1} parent=1 // pred_check_branch
      %390 = sbr.rel (%p388) target = $region37
    $region36: #{tpu_custom_call.1} parent=1 // pred_region
      %v391 = vld [vmem:[#allocation2] sm:$0xff]
      %v392 = vld [vmem:[#allocation2 + $0x8] sm:$0xff]
      %v393 = vld [vmem:[#allocation2 + $0x10] sm:$0xff]
      %v394 = vld [vmem:[#allocation2 + $0x18] sm:$0xff]
      %v395 = vld [vmem:[#allocation2 + $0x20] sm:$0xff]
      %v396 = vld [vmem:[#allocation2 + $0x28] sm:$0xff]
      %v397 = vld [vmem:[#allocation2 + $0x30] sm:$0xff]
      %v398 = vld [vmem:[#allocation2 + $0x38] sm:$0xff]
      %v399 = vld [vmem:[#allocation2 + $0x40] sm:$0xff]
      %v400 = vld [vmem:[#allocation2 + $0x48] sm:$0xff]
      %v401 = vld [vmem:[#allocation2 + $0x50] sm:$0xff]
      %v402 = vld [vmem:[#allocation2 + $0x58] sm:$0xff]
      %v403 = vld [vmem:[#allocation2 + $0x60] sm:$0xff]
      %v404 = vld [vmem:[#allocation2 + $0x68] sm:$0xff]
      %v405 = vld [vmem:[#allocation2 + $0x70] sm:$0xff]
      %v406 = vld [vmem:[#allocation2 + $0x78] sm:$0xff]
      %v407 = vld [vmem:[%s4] sm:$0x1]
      %v409 = vlaneseq
      %v410 = vshrl.u32 %v409, 7
      %v411 = vsub.s32 0, %v410
      %v412 = vrot.slane %v407, %v411
      %v414 = vadd.f32 %v391, %v412
      %v415 = vadd.f32 %v392, %v412
      %v416 = vadd.f32 %v393, %v412
      %v417 = vadd.f32 %v394, %v412
      %v418 = vadd.f32 %v395, %v412
      %v419 = vadd.f32 %v396, %v412
      %v420 = vadd.f32 %v397, %v412
      %v421 = vadd.f32 %v398, %v412
      %v422 = vadd.f32 %v399, %v412
      %v423 = vadd.f32 %v400, %v412
      %v424 = vadd.f32 %v401, %v412
      %v425 = vadd.f32 %v402, %v412
      %v426 = vadd.f32 %v403, %v412
      %v427 = vadd.f32 %v404, %v412
      %v428 = vadd.f32 %v405, %v412
      %v429 = vadd.f32 %v406, %v412
      %430 = vst [vmem:[#allocation8] sm:$0xff] %v414
      %431 = vst [vmem:[#allocation8 + $0x8] sm:$0xff] %v415
      %432 = vst [vmem:[#allocation8 + $0x10] sm:$0xff] %v416
      %433 = vst [vmem:[#allocation8 + $0x18] sm:$0xff] %v417
      %434 = vst [vmem:[#allocation8 + $0x20] sm:$0xff] %v418
      %435 = vst [vmem:[#allocation8 + $0x28] sm:$0xff] %v419
      %436 = vst [vmem:[#allocation8 + $0x30] sm:$0xff] %v420
      %437 = vst [vmem:[#allocation8 + $0x38] sm:$0xff] %v421
      %438 = vst [vmem:[#allocation8 + $0x40] sm:$0xff] %v422
      %439 = vst [vmem:[#allocation8 + $0x48] sm:$0xff] %v423
      %440 = vst [vmem:[#allocation8 + $0x50] sm:$0xff] %v424
      %441 = vst [vmem:[#allocation8 + $0x58] sm:$0xff] %v425
      %442 = vst [vmem:[#allocation8 + $0x60] sm:$0xff] %v426
      %443 = vst [vmem:[#allocation8 + $0x68] sm:$0xff] %v427
      %444 = vst [vmem:[#allocation8 + $0x70] sm:$0xff] %v428
      %445 = vst [vmem:[#allocation8 + $0x78] sm:$0xff] %v429
    $region37: #{tpu_custom_call.1} parent=1 // pred_fallthru
      _
    // Predicated region
    $region38: #{tpu_custom_call.1} parent=1 // pred_check
      _
    $region39: #{tpu_custom_call.1} parent=1 // pred_check_branch
      %447 = sbr.rel (0) target = $region41
    $region40: #{tpu_custom_call.1} parent=1 // pred_region
      %s449 = ssub.s32 2048, 2048
      %450 = vsyncadd [#allocation5], %s449
      %s451 = sshll.u32 [#allocation8], 4
      %s452 = int_to_ptr.vmem [resolvable:$true] %s451
      %457 = dma.vmem_to_hbm [thread:$0]  %s452, 2048, %s5, [#allocation5], 128, 128, 8
    $region41: #{tpu_custom_call.1} parent=1 // pred_fallthru
      _
    // Predicated region
    $region42: #{tpu_custom_call.1} parent=1 // pred_check
      _
    $region43: #{tpu_custom_call.1} parent=1 // pred_check_branch
      %459 = sbr.rel (0) target = $region45
    $region44: #{tpu_custom_call.1} parent=1 // pred_region
      %460 = dma.done [#allocation5], 2048
    $region45: #{tpu_custom_call.1} parent=1 // pred_fallthru
      _
    %461 = vsyncpa [#allocation4], 1
    %462 = vsyncpa [#allocation7], 1
    %463 = vsyncpa [#allocation5], 1

</llo_original>
